<compile_context>
chip_gen: v7x
topology: tpu7x:2x2x1
jax: 0.10.0
libtpu: 0.0.40
codegen_flags: <defaults>
</compile_context>

<pallas_src>
import jax
import jax.numpy as jnp
from jax.experimental import pallas as pl
from jax.experimental.pallas import tpu as pltpu

NEG_SLOPE = 0.01  # torch.nn.LeakyReLU default
H1, H2, H3 = 128, 512, 128  # hidden widths fixed by the module


def _round_up(x, m):
    return ((x + m - 1) // m) * m


def _leaky_relu(h):
    return jnp.where(h > 0, h, NEG_SLOPE * h)


def mlp_kernel(x_ref,
               w1_ref, b1_ref,
               w2_ref, b2_ref,
               w3_ref, b3_ref,
               w4_ref, b4_ref,
               o_ref):
    # Whole hot path (4 matmuls + biases + LeakyReLU) fused in one grid step.
    # Weights arrive in the compute dtype (bf16 by default); x arrives f32 and
    # is cast once here (cheaper than a wrapper-side cast, which would add an
    # extra HBM round trip).  The MXU accumulates in f32; bias add + LeakyReLU
    # run in f32 and only the inter-layer activations are re-packed to the
    # compute dtype before the next dot.
    cdt = w1_ref.dtype
    h = x_ref[...].astype(cdt)

    h = jnp.dot(h, w1_ref[...], preferred_element_type=jnp.float32) + b1_ref[...]
    h = _leaky_relu(h).astype(cdt)

    h = jnp.dot(h, w2_ref[...], preferred_element_type=jnp.float32) + b2_ref[...]
    h = _leaky_relu(h).astype(cdt)

    h = jnp.dot(h, w3_ref[...], preferred_element_type=jnp.float32) + b3_ref[...]
    h = _leaky_relu(h).astype(cdt)

    h = jnp.dot(h, w4_ref[...], preferred_element_type=jnp.float32) + b4_ref[...]

    o_ref[...] = h.astype(o_ref.dtype)


def mymodel_forward(x, params, *, batch_tile=None, use_bf16=True,
                    out_dtype=jnp.float32):
    """Forward pass of MyModel.

    x: [B, feature_num] float32
    params: dict with w1..w4 ([in, out]) and b1..b4 ([1, out]) float32 arrays.
    """
    B, feature_num = x.shape
    force_num = params["w4"].shape[1]
    n_pad = _round_up(force_num, 128)  # lane-dense output block

    compute_dtype = jnp.bfloat16 if use_bf16 else jnp.float32

    # Weights: one-time cast (tiny).  Only w4/b4 are padded (N -> 128) so the
    # output write is lane-dense.  x and w1 keep K = feature_num unpadded.
    w1 = params["w1"].astype(compute_dtype)
    w2 = params["w2"].astype(compute_dtype)
    w3 = params["w3"].astype(compute_dtype)
    w4 = jnp.pad(params["w4"], ((0, 0), (0, n_pad - force_num))).astype(compute_dtype)
    b1, b2, b3 = params["b1"], params["b2"], params["b3"]          # stay f32
    b4 = jnp.pad(params["b4"], ((0, 0), (0, n_pad - force_num)))   # stays f32

    # ---- batch tiling: no zero-pad copy of x ----
    # Small batches: one full-array tile (block dims == array dims is always
    # legal).  Larger batches: >= 2 grid steps so v7x megacore can shard the
    # "parallel" axis; ragged last tile is handled by Pallas (row-wise op, so
    # garbage rows are harmless and OOB output rows are never written back).
    mult = 16 if use_bf16 else 8
    if batch_tile is None:
        if B <= 512:
            batch_tile = B
        else:
            batch_tile = min(1024, _round_up(pl.cdiv(B, 2), 256))
    elif batch_tile >= B:
        batch_tile = B
    else:
        batch_tile = _round_up(batch_tile, mult)

    grid = (pl.cdiv(B, batch_tile),)

    def resident(arr):
        # Constant block index => weights/biases stay VMEM-resident across the
        # batch grid (no re-DMA per step).
        return pl.BlockSpec(arr.shape, lambda i: (0, 0))

    in_specs = [
        pl.BlockSpec((batch_tile, feature_num), lambda i: (i, 0)),
        resident(w1), resident(b1),
        resident(w2), resident(b2),
        resident(w3), resident(b3),
        resident(w4), resident(b4),
    ]
    out_specs = pl.BlockSpec((batch_tile, n_pad), lambda i: (i, 0))

    elt = 2 if use_bf16 else 4
    weight_bytes = elt * (feature_num * H1 + H1 * H2 + H2 * H3 + H3 * n_pad)
    bias_bytes = 4 * (H1 + H2 + H3 + n_pad)
    cost = pl.CostEstimate(
        flops=2 * B * (feature_num * H1 + H1 * H2 + H2 * H3 + H3 * n_pad),
        transcendentals=0,
        bytes_accessed=(weight_bytes + bias_bytes
                        + B * feature_num * 4
                        + B * n_pad * jnp.dtype(out_dtype).itemsize),
    )

    out_padded = pl.pallas_call(
        mlp_kernel,
        out_shape=jax.ShapeDtypeStruct((B, n_pad), out_dtype),
        grid_spec=pltpu.PrefetchScalarGridSpec(
            num_scalar_prefetch=0,
            grid=grid,
            in_specs=in_specs,
            out_specs=out_specs,
        ),
        compiler_params=pltpu.CompilerParams(
            dimension_semantics=("parallel",)),
        cost_estimate=cost,
    )(x, w1, b1, w2, b2, w3, b3, w4, b4)

    # Slice away the output-lane padding (cheap XLA op).
    return out_padded[:, :force_num]


def init_params(key, feature_num, force_num):
    """Deterministic init mimicking torch.nn.Linear (uniform(-1/sqrt(fan_in), .))."""
    dims = [(feature_num, H1), (H1, H2), (H2, H3), (H3, force_num)]
    params = {}
    keys = jax.random.split(key, 2 * len(dims))
    for idx, (fan_in, fan_out) in enumerate(dims):
        bound = 1.0 / jnp.sqrt(fan_in)
        w = jax.random.uniform(keys[2 * idx], (fan_in, fan_out),
                               minval=-bound, maxval=bound, dtype=jnp.float32)
        b = jax.random.uniform(keys[2 * idx + 1], (1, fan_out),
                               minval=-bound, maxval=bound, dtype=jnp.float32)
        params[f"w{idx + 1}"] = w
        params[f"b{idx + 1}"] = b
    return params


def reference_forward(x, params):
    h = x
    for i in range(1, 5):
        h = h @ params[f"w{i}"] + params[f"b{i}"]
        if i < 4:
            h = jnp.where(h > 0, h, NEG_SLOPE * h)
    return h


if __name__ == "__main__":
    feature_num = 32
    force_num = 8
    batch = 8  # tiny demo batch: runs as a single full-array tile, no padding

    key = jax.random.PRNGKey(0)
    k_params, k_x = jax.random.split(key)
    params = init_params(k_params, feature_num, force_num)
    x = jax.random.normal(k_x, (batch, feature_num), dtype=jnp.float32)

    ref = reference_forward(x, params)

    # Default path: bf16 weights/activations on the MXU, f32 accumulation.
    out = jax.block_until_ready(mymodel_forward(x, params))
    assert out.shape == (batch, force_num)
    assert jnp.allclose(out, ref, atol=5e-2, rtol=5e-2)

    # Full-f32 path: matches the reference to fp tolerance.
    out_f32 = jax.block_until_ready(mymodel_forward(x, params, use_bf16=False))
    assert jnp.allclose(out_f32, ref, atol=1e-5, rtol=1e-5)

    print("KERNEL_OK")
</pallas_src>

<mosaic_0001>
module attributes {stable_mosaic.version = 11 : i64} {
  func.func @mlp_kernel(%arg0: i32, %arg1: memref<8x32xf32, #tpu.memory_space<vmem>>, %arg2: memref<32x128xbf16, #tpu.memory_space<vmem>>, %arg3: memref<1x128xf32, #tpu.memory_space<vmem>>, %arg4: memref<128x512xbf16, #tpu.memory_space<vmem>>, %arg5: memref<1x512xf32, #tpu.memory_space<vmem>>, %arg6: memref<512x128xbf16, #tpu.memory_space<vmem>>, %arg7: memref<1x128xf32, #tpu.memory_space<vmem>>, %arg8: memref<128x128xbf16, #tpu.memory_space<vmem>>, %arg9: memref<1x128xf32, #tpu.memory_space<vmem>>, %arg10: memref<8x128xf32, #tpu.memory_space<vmem>>) attributes {dimension_semantics = [#tpu.dimension_semantics<parallel>], iteration_bounds = array<i64: 1>, scalar_prefetch = 0 : i64, scratch_operands = 0 : i64, tpu.core_type = #tpu.core_type<tc>, window_params = [{transform_indices = @transform_0, window_bounds = array<i64: 8, 32>}, {pipeline_mode = #tpu.pipeline_mode<synchronous>, transform_indices = @transform_1, window_bounds = array<i64: 32, 128>}, {pipeline_mode = #tpu.pipeline_mode<synchronous>, transform_indices = @transform_2, window_bounds = array<i64: 1, 128>}, {pipeline_mode = #tpu.pipeline_mode<synchronous>, transform_indices = @transform_3, window_bounds = array<i64: 128, 512>}, {pipeline_mode = #tpu.pipeline_mode<synchronous>, transform_indices = @transform_4, window_bounds = array<i64: 1, 512>}, {pipeline_mode = #tpu.pipeline_mode<synchronous>, transform_indices = @transform_5, window_bounds = array<i64: 512, 128>}, {pipeline_mode = #tpu.pipeline_mode<synchronous>, transform_indices = @transform_6, window_bounds = array<i64: 1, 128>}, {pipeline_mode = #tpu.pipeline_mode<synchronous>, transform_indices = @transform_7, window_bounds = array<i64: 128, 128>}, {pipeline_mode = #tpu.pipeline_mode<synchronous>, transform_indices = @transform_8, window_bounds = array<i64: 1, 128>}, {transform_indices = @transform_9, window_bounds = array<i64: 8, 128>}]} {
    %c0 = arith.constant 0 : index
    %c0_0 = arith.constant 0 : index
    %0 = vector.load %arg1[%c0, %c0_0] : memref<8x32xf32, #tpu.memory_space<vmem>>, vector<8x32xf32>
    %1 = arith.truncf %0 : vector<8x32xf32> to vector<8x32xbf16>
    %c0_1 = arith.constant 0 : index
    %c0_2 = arith.constant 0 : index
    %2 = vector.load %arg2[%c0_1, %c0_2] : memref<32x128xbf16, #tpu.memory_space<vmem>>, vector<32x128xbf16>
    %cst = arith.constant dense<0.000000e+00> : vector<8x128xf32>
    %3 = tpu.matmul %1, %2, %cst {dimension_numbers = #tpu.dot_dimension_numbers<[1], [0], [0], [1], [0, 0, 1, 1], [], []>} : vector<8x32xbf16>, vector<32x128xbf16>, vector<8x128xf32> -> vector<8x128xf32>
    %c0_3 = arith.constant 0 : index
    %c0_4 = arith.constant 0 : index
    %4 = vector.load %arg3[%c0_3, %c0_4] : memref<1x128xf32, #tpu.memory_space<vmem>>, vector<1x128xf32>
    %5 = vector.broadcast %4 : vector<1x128xf32> to vector<8x128xf32>
    %6 = arith.addf %3, %5 : vector<8x128xf32>
    %cst_5 = arith.constant 0.000000e+00 : f32
    %7 = vector.broadcast %cst_5 : f32 to vector<8x128xf32>
    %8 = arith.cmpf ogt, %6, %7 : vector<8x128xf32>
    %cst_6 = arith.constant 0.00999999977 : f32
    %9 = vector.broadcast %cst_6 : f32 to vector<8x128xf32>
    %10 = arith.mulf %9, %6 : vector<8x128xf32>
    %11 = arith.select %8, %6, %10 : vector<8x128xi1>, vector<8x128xf32>
    %12 = arith.truncf %11 : vector<8x128xf32> to vector<8x128xbf16>
    %c0_7 = arith.constant 0 : index
    %c0_8 = arith.constant 0 : index
    %13 = vector.load %arg4[%c0_7, %c0_8] : memref<128x512xbf16, #tpu.memory_space<vmem>>, vector<128x512xbf16>
    %cst_9 = arith.constant dense<0.000000e+00> : vector<8x512xf32>
    %14 = tpu.matmul %12, %13, %cst_9 {dimension_numbers = #tpu.dot_dimension_numbers<[1], [0], [0], [1], [0, 0, 1, 1], [], []>} : vector<8x128xbf16>, vector<128x512xbf16>, vector<8x512xf32> -> vector<8x512xf32>
    %c0_10 = arith.constant 0 : index
    %c0_11 = arith.constant 0 : index
    %15 = vector.load %arg5[%c0_10, %c0_11] : memref<1x512xf32, #tpu.memory_space<vmem>>, vector<1x512xf32>
    %16 = vector.broadcast %15 : vector<1x512xf32> to vector<8x512xf32>
    %17 = arith.addf %14, %16 : vector<8x512xf32>
    %cst_12 = arith.constant 0.000000e+00 : f32
    %18 = vector.broadcast %cst_12 : f32 to vector<8x512xf32>
    %19 = arith.cmpf ogt, %17, %18 : vector<8x512xf32>
    %cst_13 = arith.constant 0.00999999977 : f32
    %20 = vector.broadcast %cst_13 : f32 to vector<8x512xf32>
    %21 = arith.mulf %20, %17 : vector<8x512xf32>
    %22 = arith.select %19, %17, %21 : vector<8x512xi1>, vector<8x512xf32>
    %23 = arith.truncf %22 : vector<8x512xf32> to vector<8x512xbf16>
    %c0_14 = arith.constant 0 : index
    %c0_15 = arith.constant 0 : index
    %24 = vector.load %arg6[%c0_14, %c0_15] : memref<512x128xbf16, #tpu.memory_space<vmem>>, vector<512x128xbf16>
    %cst_16 = arith.constant dense<0.000000e+00> : vector<8x128xf32>
    %25 = tpu.matmul %23, %24, %cst_16 {dimension_numbers = #tpu.dot_dimension_numbers<[1], [0], [0], [1], [0, 0, 1, 1], [], []>} : vector<8x512xbf16>, vector<512x128xbf16>, vector<8x128xf32> -> vector<8x128xf32>
    %c0_17 = arith.constant 0 : index
    %c0_18 = arith.constant 0 : index
    %26 = vector.load %arg7[%c0_17, %c0_18] : memref<1x128xf32, #tpu.memory_space<vmem>>, vector<1x128xf32>
    %27 = vector.broadcast %26 : vector<1x128xf32> to vector<8x128xf32>
    %28 = arith.addf %25, %27 : vector<8x128xf32>
    %cst_19 = arith.constant 0.000000e+00 : f32
    %29 = vector.broadcast %cst_19 : f32 to vector<8x128xf32>
    %30 = arith.cmpf ogt, %28, %29 : vector<8x128xf32>
    %cst_20 = arith.constant 0.00999999977 : f32
    %31 = vector.broadcast %cst_20 : f32 to vector<8x128xf32>
    %32 = arith.mulf %31, %28 : vector<8x128xf32>
    %33 = arith.select %30, %28, %32 : vector<8x128xi1>, vector<8x128xf32>
    %34 = arith.truncf %33 : vector<8x128xf32> to vector<8x128xbf16>
    %c0_21 = arith.constant 0 : index
    %c0_22 = arith.constant 0 : index
    %35 = vector.load %arg8[%c0_21, %c0_22] : memref<128x128xbf16, #tpu.memory_space<vmem>>, vector<128x128xbf16>
    %cst_23 = arith.constant dense<0.000000e+00> : vector<8x128xf32>
    %36 = tpu.matmul %34, %35, %cst_23 {dimension_numbers = #tpu.dot_dimension_numbers<[1], [0], [0], [1], [0, 0, 1, 1], [], []>} : vector<8x128xbf16>, vector<128x128xbf16>, vector<8x128xf32> -> vector<8x128xf32>
    %c0_24 = arith.constant 0 : index
    %c0_25 = arith.constant 0 : index
    %37 = vector.load %arg9[%c0_24, %c0_25] : memref<1x128xf32, #tpu.memory_space<vmem>>, vector<1x128xf32>
    %38 = vector.broadcast %37 : vector<1x128xf32> to vector<8x128xf32>
    %39 = arith.addf %36, %38 : vector<8x128xf32>
    %c0_26 = arith.constant 0 : index
    %c0_27 = arith.constant 0 : index
    %40 = vector.load %arg10[%c0_26, %c0_27] : memref<8x128xf32, #tpu.memory_space<vmem>>, vector<8x128xf32>
    tpu.vector_store %arg10[%c0_26, %c0_27], %39 {strides = array<i32>} : memref<8x128xf32, #tpu.memory_space<vmem>>, vector<8x128xf32>,
    return
  }
  func.func @transform_0(%arg0: i32) -> (i32, i32) {
    %c0_i32 = arith.constant 0 : i32
    %c0_i32_0 = arith.constant 0 : i32
    return %arg0, %c0_i32 : i32, i32
  }
  func.func @transform_1(%arg0: i32) -> (i32, i32) {
    %c0_i32 = arith.constant 0 : i32
    %c0_i32_0 = arith.constant 0 : i32
    %c0_i32_1 = arith.constant 0 : i32
    return %c0_i32, %c0_i32_0 : i32, i32
  }
  func.func @transform_2(%arg0: i32) -> (i32, i32) {
    %c0_i32 = arith.constant 0 : i32
    %c0_i32_0 = arith.constant 0 : i32
    %c0_i32_1 = arith.constant 0 : i32
    return %c0_i32, %c0_i32_0 : i32, i32
  }
  func.func @transform_3(%arg0: i32) -> (i32, i32) {
    %c0_i32 = arith.constant 0 : i32
    %c0_i32_0 = arith.constant 0 : i32
    %c0_i32_1 = arith.constant 0 : i32
    return %c0_i32, %c0_i32_0 : i32, i32
  }
  func.func @transform_4(%arg0: i32) -> (i32, i32) {
    %c0_i32 = arith.constant 0 : i32
    %c0_i32_0 = arith.constant 0 : i32
    %c0_i32_1 = arith.constant 0 : i32
    return %c0_i32, %c0_i32_0 : i32, i32
  }
  func.func @transform_5(%arg0: i32) -> (i32, i32) {
    %c0_i32 = arith.constant 0 : i32
    %c0_i32_0 = arith.constant 0 : i32
    %c0_i32_1 = arith.constant 0 : i32
    return %c0_i32, %c0_i32_0 : i32, i32
  }
  func.func @transform_6(%arg0: i32) -> (i32, i32) {
    %c0_i32 = arith.constant 0 : i32
    %c0_i32_0 = arith.constant 0 : i32
    %c0_i32_1 = arith.constant 0 : i32
    return %c0_i32, %c0_i32_0 : i32, i32
  }
  func.func @transform_7(%arg0: i32) -> (i32, i32) {
    %c0_i32 = arith.constant 0 : i32
    %c0_i32_0 = arith.constant 0 : i32
    %c0_i32_1 = arith.constant 0 : i32
    return %c0_i32, %c0_i32_0 : i32, i32
  }
  func.func @transform_8(%arg0: i32) -> (i32, i32) {
    %c0_i32 = arith.constant 0 : i32
    %c0_i32_0 = arith.constant 0 : i32
    %c0_i32_1 = arith.constant 0 : i32
    return %c0_i32, %c0_i32_0 : i32, i32
  }
  func.func @transform_9(%arg0: i32) -> (i32, i32) {
    %c0_i32 = arith.constant 0 : i32
    %c0_i32_0 = arith.constant 0 : i32
    return %arg0, %c0_i32 : i32, i32
  }
}

</mosaic_0001>

<llo_original>
// kernel: tpu_custom_call.1
$region0: #{tpu_custom_call.1}
  #allocation0 [shape = 'u32[]', space=smem, size = 0x4, offset = 0x4, fixed_abs, tag = 'smem constant byte address 0x4 - core index']
  #allocation1 [shape = 'u32[144,128]{1,0:T(1,128)}', space=vmem, size = 0x12000, scoped, tag = 'internal scratch']
  %s0 = inlined_call_operand.hbm [shape: f32[8,32], index: 0, kind: input, shape index: {}]
  %s1 = inlined_call_operand.hbm [shape: bf16[32,128], index: 1, kind: input, shape index: {}]
  %s2 = inlined_call_operand.vmem [shape: f32[1,128], index: 2, kind: input, shape index: {}]
  %s3 = inlined_call_operand.hbm [shape: bf16[128,512], index: 3, kind: input, shape index: {}]
  %s4 = inlined_call_operand.vmem [shape: f32[1,512], index: 4, kind: input, shape index: {}]
  %s5 = inlined_call_operand.hbm [shape: bf16[512,128], index: 5, kind: input, shape index: {}]
  %s6 = inlined_call_operand.vmem [shape: f32[1,128], index: 6, kind: input, shape index: {}]
  %s7 = inlined_call_operand.hbm [shape: bf16[128,128], index: 7, kind: input, shape index: {}]
  %s8 = inlined_call_operand.vmem [shape: f32[1,128], index: 8, kind: input, shape index: {}]
  %s9 = inlined_call_operand.hbm [shape: f32[8,128], index: 9, kind: output, shape index: {}]
  %s10 = sld [smem:[#allocation0]]
  $region66: #{tpu_custom_call.1} parent=0
    _
  %s12 = ssub.s32 1, %s10
  %s13 = scalar_select 0, %s12, %s10
  $region1: #{tpu_custom_call.1} parent=0
    #allocation2 [shape = 'u8[4096]{0}', space=vmem, size = 0x1000, scoped, tag = 'input window, operand 0, single buffered']
    #allocation3 [shape = 's32[1]{0}', space=sflag, size = 0x4, scoped, tag = 'scoped memory for tpu_custom_call.1']
    #allocation4 [shape = 's32[1]{0}', space=sflag, size = 0x4, scoped, tag = 'scoped memory for tpu_custom_call.1']
    #allocation5 [shape = 'u8[8192]{0}', space=vmem, size = 0x2000, scoped, tag = 'input window, operand 1, single buffered']
    #allocation6 [shape = 's32[1]{0}', space=sflag, size = 0x4, scoped, tag = 'scoped memory for tpu_custom_call.1']
    #allocation7 [shape = 'u8[131072]{0}', space=vmem, size = 0x20000, scoped, tag = 'input window, operand 3, single buffered']
    #allocation8 [shape = 'u8[131072]{0}', space=vmem, size = 0x20000, scoped, tag = 'input window, operand 5, single buffered']
    #allocation9 [shape = 's32[1]{0}', space=sflag, size = 0x4, scoped, tag = 'scoped memory for tpu_custom_call.1']
    #allocation10 [shape = 'u8[32768]{0}', space=vmem, size = 0x8000, scoped, tag = 'input window, operand 7, single buffered']
    #allocation11 [shape = 'u8[4096]{0}', space=vmem, size = 0x1000, scoped, tag = 'output window, operand 0, single buffered']
    %14 = vsyncpa [#allocation3], 0
    %15 = vsyncpa [#allocation6], 0
    %16 = vsyncpa [#allocation9], 0
    %17 = vsyncpa [#allocation4], 0
    // Predicated region
    $region2: #{tpu_custom_call.1} parent=1 // pred_check
      _
    $region3: #{tpu_custom_call.1} parent=1 // pred_check_branch
      %19 = sbr.rel (0) target = $region5
    $region4: #{tpu_custom_call.1} parent=1 // pred_region
      %s21 = ssub.s32 128, 128
      %22 = vsyncadd [#allocation3], %s21
      %s24 = sshll.u32 [#allocation2], 4
      %s25 = int_to_ptr.vmem [resolvable:$true] %s24
      %27 = dma.hbm_to_vmem [thread:$0]  %s0, 128, %s25, [#allocation3]
    $region5: #{tpu_custom_call.1} parent=1 // pred_fallthru
      _
    // Predicated region
    $region6: #{tpu_custom_call.1} parent=1 // pred_check
      _
    $region7: #{tpu_custom_call.1} parent=1 // pred_check_branch
      %29 = sbr.rel (0) target = $region9
    $region8: #{tpu_custom_call.1} parent=1 // pred_region
      %s31 = ssub.s32 256, 256
      %32 = vsyncadd [#allocation6], %s31
      %s33 = sshll.u32 [#allocation5], 4
      %s34 = int_to_ptr.vmem [resolvable:$true] %s33
      %39 = dma.hbm_to_vmem [thread:$0]  %s1, 256, %s34, [#allocation6], 64, 64, 4
    $region9: #{tpu_custom_call.1} parent=1 // pred_fallthru
      _
    // Predicated region
    $region10: #{tpu_custom_call.1} parent=1 // pred_check
      _
    $region11: #{tpu_custom_call.1} parent=1 // pred_check_branch
      %41 = sbr.rel (0) target = $region13
    $region12: #{tpu_custom_call.1} parent=1 // pred_region
      _
    $region13: #{tpu_custom_call.1} parent=1 // pred_fallthru
      _
    // Predicated region
    $region14: #{tpu_custom_call.1} parent=1 // pred_check
      _
    $region15: #{tpu_custom_call.1} parent=1 // pred_check_branch
      %43 = sbr.rel (0) target = $region17
    $region16: #{tpu_custom_call.1} parent=1 // pred_region
      %s45 = ssub.s32 4096, 4096
      %46 = vsyncadd [#allocation6], %s45
      %s47 = sshll.u32 [#allocation7], 4
      %s48 = int_to_ptr.vmem [resolvable:$true] %s47
      %53 = dma.hbm_to_vmem [thread:$0]  %s3, 4096, %s48, [#allocation6], 256, 256, 16
    $region17: #{tpu_custom_call.1} parent=1 // pred_fallthru
      _
    // Predicated region
    $region18: #{tpu_custom_call.1} parent=1 // pred_check
      _
    $region19: #{tpu_custom_call.1} parent=1 // pred_check_branch
      %55 = sbr.rel (0) target = $region21
    $region20: #{tpu_custom_call.1} parent=1 // pred_region
      _
    $region21: #{tpu_custom_call.1} parent=1 // pred_fallthru
      _
    // Predicated region
    $region22: #{tpu_custom_call.1} parent=1 // pred_check
      _
    $region23: #{tpu_custom_call.1} parent=1 // pred_check_branch
      %57 = sbr.rel (0) target = $region25
    $region24: #{tpu_custom_call.1} parent=1 // pred_region
      %s59 = ssub.s32 4096, 4096
      %60 = vsyncadd [#allocation9], %s59
      %s61 = sshll.u32 [#allocation8], 4
      %s62 = int_to_ptr.vmem [resolvable:$true] %s61
      %67 = dma.hbm_to_vmem [thread:$0]  %s5, 4096, %s62, [#allocation9], 64, 64, 4
    $region25: #{tpu_custom_call.1} parent=1 // pred_fallthru
      _
    // Predicated region
    $region26: #{tpu_custom_call.1} parent=1 // pred_check
      _
    $region27: #{tpu_custom_call.1} parent=1 // pred_check_branch
      %69 = sbr.rel (0) target = $region29
    $region28: #{tpu_custom_call.1} parent=1 // pred_region
      _
    $region29: #{tpu_custom_call.1} parent=1 // pred_fallthru
      _
    // Predicated region
    $region30: #{tpu_custom_call.1} parent=1 // pred_check
      _
    $region31: #{tpu_custom_call.1} parent=1 // pred_check_branch
      %71 = sbr.rel (0) target = $region33
    $region32: #{tpu_custom_call.1} parent=1 // pred_region
      %s73 = ssub.s32 1024, 1024
      %74 = vsyncadd [#allocation9], %s73
      %s75 = sshll.u32 [#allocation10], 4
      %s76 = int_to_ptr.vmem [resolvable:$true] %s75
      %81 = dma.hbm_to_vmem [thread:$0]  %s7, 1024, %s76, [#allocation9], 64, 64, 4
    $region33: #{tpu_custom_call.1} parent=1 // pred_fallthru
      _
    // Predicated region
    $region34: #{tpu_custom_call.1} parent=1 // pred_check
      _
    $region35: #{tpu_custom_call.1} parent=1 // pred_check_branch
      %83 = sbr.rel (0) target = $region37
    $region36: #{tpu_custom_call.1} parent=1 // pred_region
      _
    $region37: #{tpu_custom_call.1} parent=1 // pred_fallthru
      _
    // Predicated region
    $region38: #{tpu_custom_call.1} parent=1 // pred_check
      _
    $region39: #{tpu_custom_call.1} parent=1 // pred_check_branch
      %85 = sbr.rel (0) target = $region41
    $region40: #{tpu_custom_call.1} parent=1 // pred_region
      %86 = dma.done [#allocation3], 128
    $region41: #{tpu_custom_call.1} parent=1 // pred_fallthru
      _
    // Predicated region
    $region42: #{tpu_custom_call.1} parent=1 // pred_check
      _
    $region43: #{tpu_custom_call.1} parent=1 // pred_check_branch
      %88 = sbr.rel (0) target = $region45
    $region44: #{tpu_custom_call.1} parent=1 // pred_region
      %89 = dma.done [#allocation6], 256
    $region45: #{tpu_custom_call.1} parent=1 // pred_fallthru
      _
    // Predicated region
    $region46: #{tpu_custom_call.1} parent=1 // pred_check
      _
    $region47: #{tpu_custom_call.1} parent=1 // pred_check_branch
      %91 = sbr.rel (0) target = $region49
    $region48: #{tpu_custom_call.1} parent=1 // pred_region
      %92 = dma.done [#allocation6], 4096
    $region49: #{tpu_custom_call.1} parent=1 // pred_fallthru
      _
    // Predicated region
    $region50: #{tpu_custom_call.1} parent=1 // pred_check
      _
    $region51: #{tpu_custom_call.1} parent=1 // pred_check_branch
      %94 = sbr.rel (0) target = $region53
    $region52: #{tpu_custom_call.1} parent=1 // pred_region
      %95 = dma.done [#allocation9], 4096
    $region53: #{tpu_custom_call.1} parent=1 // pred_fallthru
      _
    // Predicated region
    $region54: #{tpu_custom_call.1} parent=1 // pred_check
      _
    $region55: #{tpu_custom_call.1} parent=1 // pred_check_branch
      %97 = sbr.rel (0) target = $region57
    $region56: #{tpu_custom_call.1} parent=1 // pred_region
      %98 = dma.done [#allocation9], 1024
    $region57: #{tpu_custom_call.1} parent=1 // pred_fallthru
      _
    %v100 = vld [vmem:[#allocation2] sm:$0xff]
    %v101 = vpack.c.bf16 %v100, %v100
    %v102 = vld [vmem:[#allocation5] sm:$0xf]
    %v103 = vld [vmem:[#allocation5 + $0x4] sm:$0xf]
    %v104 = vld [vmem:[#allocation5 + $0x8] sm:$0xf]
    %v105 = vld [vmem:[#allocation5 + $0xc] sm:$0xf]
    %v106 = vld [vmem:[%s2] sm:$0x1]
    %v108 = vlaneseq
    %v109 = vshrl.u32 %v108, 7
    %v110 = vsub.s32 0, %v109
    %v111 = vrot.slane %v106, %v110
    %v117 = vunpack.c.l.b16 %v102
    %v118 = vunpack.c.l.b16 %v103
    %v119 = vunpack.c.l.b16 %v104
    %v120 = vunpack.c.l.b16 %v105
    %v121 = vpack.c.b16 %v118, %v117
    %v122 = vpack.c.b16 %v120, %v119
    %vm125 = vcmask 261120
    %v127 = vsel %vm125, %v101, 0
    %129 = vmatprep.subr.bf16.mxu0 0
    %130 = vmatpush1.bf16.msra.mxu0 %v121
    %131 = vmatprep.subr.bf16.mxu0 0
    %132 = vmatpush1.bf16.msra.mxu0 %v122
    %133 = vmatprep.subr.bf16.mxu0 0
    %134 = vmatpush1.bf16.msra.mxu0 0
    %135 = vmatprep.subr.bf16.mxu0 0
    %136 = vmatpush1.bf16.msra.mxu0 0
    %137 = vmatprep.subr.bf16.mxu0 0
    %138 = vmatpush1.bf16.msra.mxu0 0
    %139 = vmatprep.subr.bf16.mxu0 0
    %140 = vmatpush1.bf16.msra.mxu0 0
    %141 = vmatprep.subr.bf16.mxu0 0
    %142 = vmatpush1.bf16.msra.mxu0 0
    %143 = vmatprep.subr.bf16.mxu0 0
    %144 = vmatpush1.bf16.msra.mxu0 0
    %145 = vmatprep.subr.bf16.mxu0 0
    %146 = vmatpush1.bf16.msra.mxu0 0
    %147 = vmatprep.subr.bf16.mxu0 0
    %148 = vmatpush1.bf16.msra.mxu0 0
    %149 = vmatprep.subr.bf16.mxu0 0
    %150 = vmatpush1.bf16.msra.mxu0 0
    %151 = vmatprep.subr.bf16.mxu0 0
    %152 = vmatpush1.bf16.msra.mxu0 0
    %153 = vmatprep.subr.bf16.mxu0 0
    %154 = vmatpush1.bf16.msra.mxu0 0
    %155 = vmatprep.subr.bf16.mxu0 0
    %156 = vmatpush1.bf16.msra.mxu0 0
    %157 = vmatprep.subr.bf16.mxu0 0
    %158 = vmatpush1.bf16.msra.mxu0 0
    %159 = vmatprep.subr.bf16.mxu0 0
    %160 = vmatpush1.bf16.msra.mxu0 0
    %161 = vmatprep.mubr.bf16.mxu0 0
    %162 = vmatmul.mubr.bf16.gmra.mrb[0].mxu0 %v127
    %v163 = vpop.f32.mrb[0].mxu0
    %v164 = vadd.f32 %v111, %v163
    %v165 = vpop.f32.mrb[0].mxu0
    %v166 = vpop.f32.mrb[0].mxu0
    %v167 = vpop.f32.mrb[0].mxu0
    %168 = vdwg.mxu0
    %vm169 = vcmp.gt.f32.partialorder %v164, 0.0
    %v170 = vmul.f32 %v164, 0.01
    %v171 = vsel %vm169, %v164, %v170
    %v172 = vpack.c.bf16 %v171, %v171
    %v173 = vld [vmem:[#allocation7] sm:$0xff]
    %v174 = vld [vmem:[#allocation7 + $0x8] sm:$0xff]
    %v175 = vld [vmem:[#allocation7 + $0x10] sm:$0xff]
    %v176 = vld [vmem:[#allocation7 + $0x18] sm:$0xff]
    %v177 = vld [vmem:[#allocation7 + $0x20] sm:$0xff]
    %v178 = vld [vmem:[#allocation7 + $0x28] sm:$0xff]
    %v179 = vld [vmem:[#allocation7 + $0x30] sm:$0xff]
    %v180 = vld [vmem:[#allocation7 + $0x38] sm:$0xff]
    %v181 = vld [vmem:[#allocation7 + $0x40] sm:$0xff]
    %v182 = vld [vmem:[#allocation7 + $0x48] sm:$0xff]
    %v183 = vld [vmem:[#allocation7 + $0x50] sm:$0xff]
    %v184 = vld [vmem:[#allocation7 + $0x58] sm:$0xff]
    %v185 = vld [vmem:[#allocation7 + $0x60] sm:$0xff]
    %v186 = vld [vmem:[#allocation7 + $0x68] sm:$0xff]
    %v187 = vld [vmem:[#allocation7 + $0x70] sm:$0xff]
    %v188 = vld [vmem:[#allocation7 + $0x78] sm:$0xff]
    %v189 = vld [vmem:[#allocation7 + $0x80] sm:$0xff]
    %v190 = vld [vmem:[#allocation7 + $0x88] sm:$0xff]
    %v191 = vld [vmem:[#allocation7 + $0x90] sm:$0xff]
    %v192 = vld [vmem:[#allocation7 + $0x98] sm:$0xff]
    %v193 = vld [vmem:[#allocation7 + $0xa0] sm:$0xff]
    %v194 = vld [vmem:[#allocation7 + $0xa8] sm:$0xff]
    %v195 = vld [vmem:[#allocation7 + $0xb0] sm:$0xff]
    %v196 = vld [vmem:[#allocation7 + $0xb8] sm:$0xff]
    %v197 = vld [vmem:[#allocation7 + $0xc0] sm:$0xff]
    %v198 = vld [vmem:[#allocation7 + $0xc8] sm:$0xff]
    %v199 = vld [vmem:[#allocation7 + $0xd0] sm:$0xff]
    %v200 = vld [vmem:[#allocation7 + $0xd8] sm:$0xff]
    %v201 = vld [vmem:[#allocation7 + $0xe0] sm:$0xff]
    %v202 = vld [vmem:[#allocation7 + $0xe8] sm:$0xff]
    %v203 = vld [vmem:[#allocation7 + $0xf0] sm:$0xff]
    %v204 = vld [vmem:[#allocation7 + $0xf8] sm:$0xff]
    %v205 = vld [vmem:[%s4] sm:$0xf]
    %v207 = vlaneseq
    %v208 = vshrl.u32 %v207, 7
    %v209 = vsub.s32 0, %v208
    %v210 = vrot.slane %v205, %v209
    %v211 = vlaneseq
    %v212 = vshrl.u32 %v211, 7
    %v213 = vsub.s32 1, %v212
    %v214 = vrot.slane %v205, %v213
    %v215 = vlaneseq
    %v216 = vshrl.u32 %v215, 7
    %v217 = vsub.s32 2, %v216
    %v218 = vrot.slane %v205, %v217
    %v219 = vlaneseq
    %v220 = vshrl.u32 %v219, 7
    %v221 = vsub.s32 3, %v220
    %v222 = vrot.slane %v205, %v221
    %v259 = vunpack.c.l.b16 %v173
    %v260 = vunpack.c.h.b16 %v173
    %v261 = vunpack.c.l.b16 %v174
    %v262 = vunpack.c.h.b16 %v174
    %v263 = vunpack.c.l.b16 %v175
    %v264 = vunpack.c.h.b16 %v175
    %v265 = vunpack.c.l.b16 %v176
    %v266 = vunpack.c.h.b16 %v176
    %v267 = vunpack.c.l.b16 %v177
    %v268 = vunpack.c.h.b16 %v177
    %v269 = vunpack.c.l.b16 %v178
    %v270 = vunpack.c.h.b16 %v178
    %v271 = vunpack.c.l.b16 %v179
    %v272 = vunpack.c.h.b16 %v179
    %v273 = vunpack.c.l.b16 %v180
    %v274 = vunpack.c.h.b16 %v180
    %v275 = vunpack.c.l.b16 %v181
    %v276 = vunpack.c.h.b16 %v181
    %v277 = vunpack.c.l.b16 %v182
    %v278 = vunpack.c.h.b16 %v182
    %v279 = vunpack.c.l.b16 %v183
    %v280 = vunpack.c.h.b16 %v183
    %v281 = vunpack.c.l.b16 %v184
    %v282 = vunpack.c.h.b16 %v184
    %v283 = vunpack.c.l.b16 %v185
    %v284 = vunpack.c.h.b16 %v185
    %v285 = vunpack.c.l.b16 %v186
    %v286 = vunpack.c.h.b16 %v186
    %v287 = vunpack.c.l.b16 %v187
    %v288 = vunpack.c.h.b16 %v187
    %v289 = vunpack.c.l.b16 %v188
    %v290 = vunpack.c.h.b16 %v188
    %v291 = vunpack.c.l.b16 %v189
    %v292 = vunpack.c.h.b16 %v189
    %v293 = vunpack.c.l.b16 %v190
    %v294 = vunpack.c.h.b16 %v190
    %v295 = vunpack.c.l.b16 %v191
    %v296 = vunpack.c.h.b16 %v191
    %v297 = vunpack.c.l.b16 %v192
    %v298 = vunpack.c.h.b16 %v192
    %v299 = vunpack.c.l.b16 %v193
    %v300 = vunpack.c.h.b16 %v193
    %v301 = vunpack.c.l.b16 %v194
    %v302 = vunpack.c.h.b16 %v194
    %v303 = vunpack.c.l.b16 %v195
    %v304 = vunpack.c.h.b16 %v195
    %v305 = vunpack.c.l.b16 %v196
    %v306 = vunpack.c.h.b16 %v196
    %v307 = vunpack.c.l.b16 %v197
    %v308 = vunpack.c.h.b16 %v197
    %v309 = vunpack.c.l.b16 %v198
    %v310 = vunpack.c.h.b16 %v198
    %v311 = vunpack.c.l.b16 %v199
    %v312 = vunpack.c.h.b16 %v199
    %v313 = vunpack.c.l.b16 %v200
    %v314 = vunpack.c.h.b16 %v200
    %v315 = vunpack.c.l.b16 %v201
    %v316 = vunpack.c.h.b16 %v201
    %v317 = vunpack.c.l.b16 %v202
    %v318 = vunpack.c.h.b16 %v202
    %v319 = vunpack.c.l.b16 %v203
    %v320 = vunpack.c.h.b16 %v203
    %v321 = vunpack.c.l.b16 %v204
    %v322 = vunpack.c.h.b16 %v204
    %v323 = vpack.c.b16 %v263, %v259
    %v324 = vpack.c.b16 %v264, %v260
    %v325 = vpack.c.b16 %v265, %v261
    %v326 = vpack.c.b16 %v266, %v262
    %v327 = vpack.c.b16 %v271, %v267
    %v328 = vpack.c.b16 %v272, %v268
    %v329 = vpack.c.b16 %v273, %v269
    %v330 = vpack.c.b16 %v274, %v270
    %v331 = vpack.c.b16 %v279, %v275
    %v332 = vpack.c.b16 %v280, %v276
    %v333 = vpack.c.b16 %v281, %v277
    %v334 = vpack.c.b16 %v282, %v278
    %v335 = vpack.c.b16 %v287, %v283
    %v336 = vpack.c.b16 %v288, %v284
    %v337 = vpack.c.b16 %v289, %v285
    %v338 = vpack.c.b16 %v290, %v286
    %v339 = vpack.c.b16 %v295, %v291
    %v340 = vpack.c.b16 %v296, %v292
    %v341 = vpack.c.b16 %v297, %v293
    %v342 = vpack.c.b16 %v298, %v294
    %v343 = vpack.c.b16 %v303, %v299
    %v344 = vpack.c.b16 %v304, %v300
    %v345 = vpack.c.b16 %v305, %v301
    %v346 = vpack.c.b16 %v306, %v302
    %v347 = vpack.c.b16 %v311, %v307
    %v348 = vpack.c.b16 %v312, %v308
    %v349 = vpack.c.b16 %v313, %v309
    %v350 = vpack.c.b16 %v314, %v310
    %v351 = vpack.c.b16 %v319, %v315
    %v352 = vpack.c.b16 %v320, %v316
    %v353 = vpack.c.b16 %v321, %v317
    %v354 = vpack.c.b16 %v322, %v318
    %387 = vmatprep.subr.bf16.mxu0 %v324
    %388 = vmatpush1.bf16.msra.mxu0 %v323
    %389 = vmatprep.subr.bf16.mxu0 %v328
    %390 = vmatpush1.bf16.msra.mxu0 %v327
    %391 = vmatprep.subr.bf16.mxu0 %v332
    %392 = vmatpush1.bf16.msra.mxu0 %v331
    %393 = vmatprep.subr.bf16.mxu0 %v336
    %394 = vmatpush1.bf16.msra.mxu0 %v335
    %395 = vmatprep.subr.bf16.mxu0 %v340
    %396 = vmatpush1.bf16.msra.mxu0 %v339
    %397 = vmatprep.subr.bf16.mxu0 %v344
    %398 = vmatpush1.bf16.msra.mxu0 %v343
    %399 = vmatprep.subr.bf16.mxu0 %v348
    %400 = vmatpush1.bf16.msra.mxu0 %v347
    %401 = vmatprep.subr.bf16.mxu0 %v352
    %402 = vmatpush1.bf16.msra.mxu0 %v351
    %403 = vmatprep.subr.bf16.mxu0 0
    %404 = vmatpush1.bf16.msra.mxu0 0
    %405 = vmatprep.subr.bf16.mxu0 0
    %406 = vmatpush1.bf16.msra.mxu0 0
    %407 = vmatprep.subr.bf16.mxu0 0
    %408 = vmatpush1.bf16.msra.mxu0 0
    %409 = vmatprep.subr.bf16.mxu0 0
    %410 = vmatpush1.bf16.msra.mxu0 0
    %411 = vmatprep.subr.bf16.mxu0 0
    %412 = vmatpush1.bf16.msra.mxu0 0
    %413 = vmatprep.subr.bf16.mxu0 0
    %414 = vmatpush1.bf16.msra.mxu0 0
    %415 = vmatprep.subr.bf16.mxu0 0
    %416 = vmatpush1.bf16.msra.mxu0 0
    %417 = vmatprep.subr.bf16.mxu0 0
    %418 = vmatpush1.bf16.msra.mxu0 0
    %419 = vmatprep.mubr.bf16.mxu0 0
    %420 = vmatmul.mubr.bf16.gmra.mrb[0].mxu0 %v172
    %v421 = vpop.f32.mrb[0].mxu0
    %v422 = vadd.f32 %v210, %v421
    %v423 = vpop.f32.mrb[0].mxu0
    %v424 = vadd.f32 %v214, %v423
    %v425 = vpop.f32.mrb[0].mxu0
    %v426 = vpop.f32.mrb[0].mxu0
    %427 = vdwg.mxu0
    %428 = vmatprep.subr.bf16.mxu0 %v326
    %429 = vmatpush1.bf16.msra.mxu0 %v325
    %430 = vmatprep.subr.bf16.mxu0 %v330
    %431 = vmatpush1.bf16.msra.mxu0 %v329
    %432 = vmatprep.subr.bf16.mxu0 %v334
    %433 = vmatpush1.bf16.msra.mxu0 %v333
    %434 = vmatprep.subr.bf16.mxu0 %v338
    %435 = vmatpush1.bf16.msra.mxu0 %v337
    %436 = vmatprep.subr.bf16.mxu0 %v342
    %437 = vmatpush1.bf16.msra.mxu0 %v341
    %438 = vmatprep.subr.bf16.mxu0 %v346
    %439 = vmatpush1.bf16.msra.mxu0 %v345
    %440 = vmatprep.subr.bf16.mxu0 %v350
    %441 = vmatpush1.bf16.msra.mxu0 %v349
    %442 = vmatprep.subr.bf16.mxu0 %v354
    %443 = vmatpush1.bf16.msra.mxu0 %v353
    %444 = vmatprep.subr.bf16.mxu0 0
    %445 = vmatpush1.bf16.msra.mxu0 0
    %446 = vmatprep.subr.bf16.mxu0 0
    %447 = vmatpush1.bf16.msra.mxu0 0
    %448 = vmatprep.subr.bf16.mxu0 0
    %449 = vmatpush1.bf16.msra.mxu0 0
    %450 = vmatprep.subr.bf16.mxu0 0
    %451 = vmatpush1.bf16.msra.mxu0 0
    %452 = vmatprep.subr.bf16.mxu0 0
    %453 = vmatpush1.bf16.msra.mxu0 0
    %454 = vmatprep.subr.bf16.mxu0 0
    %455 = vmatpush1.bf16.msra.mxu0 0
    %456 = vmatprep.subr.bf16.mxu0 0
    %457 = vmatpush1.bf16.msra.mxu0 0
    %458 = vmatprep.subr.bf16.mxu0 0
    %459 = vmatpush1.bf16.msra.mxu0 0
    %460 = vmatprep.mubr.bf16.mxu0 0
    %461 = vmatmul.mubr.bf16.gmra.mrb[0].mxu0 %v172
    %v462 = vpop.f32.mrb[0].mxu0
    %v463 = vadd.f32 %v218, %v462
    %v464 = vpop.f32.mrb[0].mxu0
    %v465 = vadd.f32 %v222, %v464
    %v466 = vpop.f32.mrb[0].mxu0
    %v467 = vpop.f32.mrb[0].mxu0
    %468 = vdwg.mxu0
    %vm469 = vcmp.gt.f32.partialorder %v422, 0.0
    %vm470 = vcmp.gt.f32.partialorder %v424, 0.0
    %vm471 = vcmp.gt.f32.partialorder %v463, 0.0
    %vm472 = vcmp.gt.f32.partialorder %v465, 0.0
    %v473 = vmul.f32 %v422, 0.01
    %v474 = vmul.f32 %v424, 0.01
    %v475 = vmul.f32 %v463, 0.01
    %v476 = vmul.f32 %v465, 0.01
    %v477 = vsel %vm469, %v422, %v473
    %v478 = vsel %vm470, %v424, %v474
    %v479 = vsel %vm471, %v463, %v475
    %v480 = vsel %vm472, %v465, %v476
    %v481 = vpack.c.bf16 %v477, %v477
    %v482 = vpack.c.bf16 %v478, %v478
    %v483 = vpack.c.bf16 %v479, %v479
    %v484 = vpack.c.bf16 %v480, %v480
    %v485 = vld [vmem:[#allocation8] sm:$0xf]
    %v486 = vld [vmem:[#allocation8 + $0x4] sm:$0xf]
    %v487 = vld [vmem:[#allocation8 + $0x8] sm:$0xf]
    %v488 = vld [vmem:[#allocation8 + $0xc] sm:$0xf]
    %v489 = vld [vmem:[#allocation8 + $0x10] sm:$0xf]
    %v490 = vld [vmem:[#allocation8 + $0x14] sm:$0xf]
    %v491 = vld [vmem:[#allocation8 + $0x18] sm:$0xf]
    %v492 = vld [vmem:[#allocation8 + $0x1c] sm:$0xf]
    %v493 = vld [vmem:[#allocation8 + $0x20] sm:$0xf]
    %v494 = vld [vmem:[#allocation8 + $0x24] sm:$0xf]
    %v495 = vld [vmem:[#allocation8 + $0x28] sm:$0xf]
    %v496 = vld [vmem:[#allocation8 + $0x2c] sm:$0xf]
    %v497 = vld [vmem:[#allocation8 + $0x30] sm:$0xf]
    %v498 = vld [vmem:[#allocation8 + $0x34] sm:$0xf]
    %v499 = vld [vmem:[#allocation8 + $0x38] sm:$0xf]
    %v500 = vld [vmem:[#allocation8 + $0x3c] sm:$0xf]
    %v501 = vld [vmem:[#allocation8 + $0x40] sm:$0xf]
    %v502 = vld [vmem:[#allocation8 + $0x44] sm:$0xf]
    %v503 = vld [vmem:[#allocation8 + $0x48] sm:$0xf]
    %v504 = vld [vmem:[#allocation8 + $0x4c] sm:$0xf]
    %v505 = vld [vmem:[#allocation8 + $0x50] sm:$0xf]
    %v506 = vld [vmem:[#allocation8 + $0x54] sm:$0xf]
    %v507 = vld [vmem:[#allocation8 + $0x58] sm:$0xf]
    %v508 = vld [vmem:[#allocation8 + $0x5c] sm:$0xf]
    %v509 = vld [vmem:[#allocation8 + $0x60] sm:$0xf]
    %v510 = vld [vmem:[#allocation8 + $0x64] sm:$0xf]
    %v511 = vld [vmem:[#allocation8 + $0x68] sm:$0xf]
    %v512 = vld [vmem:[#allocation8 + $0x6c] sm:$0xf]
    %v513 = vld [vmem:[#allocation8 + $0x70] sm:$0xf]
    %v514 = vld [vmem:[#allocation8 + $0x74] sm:$0xf]
    %v515 = vld [vmem:[#allocation8 + $0x78] sm:$0xf]
    %v516 = vld [vmem:[#allocation8 + $0x7c] sm:$0xf]
    %v517 = vld [vmem:[#allocation8 + $0x80] sm:$0xf]
    %v518 = vld [vmem:[#allocation8 + $0x84] sm:$0xf]
    %v519 = vld [vmem:[#allocation8 + $0x88] sm:$0xf]
    %v520 = vld [vmem:[#allocation8 + $0x8c] sm:$0xf]
    %v521 = vld [vmem:[#allocation8 + $0x90] sm:$0xf]
    %v522 = vld [vmem:[#allocation8 + $0x94] sm:$0xf]
    %v523 = vld [vmem:[#allocation8 + $0x98] sm:$0xf]
    %v524 = vld [vmem:[#allocation8 + $0x9c] sm:$0xf]
    %v525 = vld [vmem:[#allocation8 + $0xa0] sm:$0xf]
    %v526 = vld [vmem:[#allocation8 + $0xa4] sm:$0xf]
    %v527 = vld [vmem:[#allocation8 + $0xa8] sm:$0xf]
    %v528 = vld [vmem:[#allocation8 + $0xac] sm:$0xf]
    %v529 = vld [vmem:[#allocation8 + $0xb0] sm:$0xf]
    %v530 = vld [vmem:[#allocation8 + $0xb4] sm:$0xf]
    %v531 = vld [vmem:[#allocation8 + $0xb8] sm:$0xf]
    %v532 = vld [vmem:[#allocation8 + $0xbc] sm:$0xf]
    %v533 = vld [vmem:[#allocation8 + $0xc0] sm:$0xf]
    %v534 = vld [vmem:[#allocation8 + $0xc4] sm:$0xf]
    %v535 = vld [vmem:[#allocation8 + $0xc8] sm:$0xf]
    %v536 = vld [vmem:[#allocation8 + $0xcc] sm:$0xf]
    %v537 = vld [vmem:[#allocation8 + $0xd0] sm:$0xf]
    %v538 = vld [vmem:[#allocation8 + $0xd4] sm:$0xf]
    %v539 = vld [vmem:[#allocation8 + $0xd8] sm:$0xf]
    %v540 = vld [vmem:[#allocation8 + $0xdc] sm:$0xf]
    %v541 = vld [vmem:[#allocation8 + $0xe0] sm:$0xf]
    %v542 = vld [vmem:[#allocation8 + $0xe4] sm:$0xf]
    %v543 = vld [vmem:[#allocation8 + $0xe8] sm:$0xf]
    %v544 = vld [vmem:[#allocation8 + $0xec] sm:$0xf]
    %v545 = vld [vmem:[#allocation8 + $0xf0] sm:$0xf]
    %v546 = vld [vmem:[#allocation8 + $0xf4] sm:$0xf]
    %v547 = vld [vmem:[#allocation8 + $0xf8] sm:$0xf]
    %v548 = vld [vmem:[#allocation8 + $0xfc] sm:$0xf]
    %v549 = vld [vmem:[%s6] sm:$0x1]
    %v551 = vlaneseq
    %v552 = vshrl.u32 %v551, 7
    %v553 = vsub.s32 0, %v552
    %v554 = vrot.slane %v549, %v553
    %v620 = vunpack.c.l.b16 %v485
    %v621 = vunpack.c.l.b16 %v486
    %v622 = vunpack.c.l.b16 %v487
    %v623 = vunpack.c.l.b16 %v488
    %v624 = vunpack.c.l.b16 %v489
    %v625 = vunpack.c.l.b16 %v490
    %v626 = vunpack.c.l.b16 %v491
    %v627 = vunpack.c.l.b16 %v492
    %v628 = vunpack.c.l.b16 %v493
    %v629 = vunpack.c.l.b16 %v494
    %v630 = vunpack.c.l.b16 %v495
    %v631 = vunpack.c.l.b16 %v496
    %v632 = vunpack.c.l.b16 %v497
    %v633 = vunpack.c.l.b16 %v498
    %v634 = vunpack.c.l.b16 %v499
    %v635 = vunpack.c.l.b16 %v500
    %v636 = vunpack.c.l.b16 %v501
    %v637 = vunpack.c.l.b16 %v502
    %v638 = vunpack.c.l.b16 %v503
    %v639 = vunpack.c.l.b16 %v504
    %v640 = vunpack.c.l.b16 %v505
    %v641 = vunpack.c.l.b16 %v506
    %v642 = vunpack.c.l.b16 %v507
    %v643 = vunpack.c.l.b16 %v508
    %v644 = vunpack.c.l.b16 %v509
    %v645 = vunpack.c.l.b16 %v510
    %v646 = vunpack.c.l.b16 %v511
    %v647 = vunpack.c.l.b16 %v512
    %v648 = vunpack.c.l.b16 %v513
    %v649 = vunpack.c.l.b16 %v514
    %v650 = vunpack.c.l.b16 %v515
    %v651 = vunpack.c.l.b16 %v516
    %v652 = vunpack.c.l.b16 %v517
    %v653 = vunpack.c.l.b16 %v518
    %v654 = vunpack.c.l.b16 %v519
    %v655 = vunpack.c.l.b16 %v520
    %v656 = vunpack.c.l.b16 %v521
    %v657 = vunpack.c.l.b16 %v522
    %v658 = vunpack.c.l.b16 %v523
    %v659 = vunpack.c.l.b16 %v524
    %v660 = vunpack.c.l.b16 %v525
    %v661 = vunpack.c.l.b16 %v526
    %v662 = vunpack.c.l.b16 %v527
    %v663 = vunpack.c.l.b16 %v528
    %v664 = vunpack.c.l.b16 %v529
    %v665 = vunpack.c.l.b16 %v530
    %v666 = vunpack.c.l.b16 %v531
    %v667 = vunpack.c.l.b16 %v532
    %v668 = vunpack.c.l.b16 %v533
    %v669 = vunpack.c.l.b16 %v534
    %v670 = vunpack.c.l.b16 %v535
    %v671 = vunpack.c.l.b16 %v536
    %v672 = vunpack.c.l.b16 %v537
    %v673 = vunpack.c.l.b16 %v538
    %v674 = vunpack.c.l.b16 %v539
    %v675 = vunpack.c.l.b16 %v540
    %v676 = vunpack.c.l.b16 %v541
    %v677 = vunpack.c.l.b16 %v542
    %v678 = vunpack.c.l.b16 %v543
    %v679 = vunpack.c.l.b16 %v544
    %v680 = vunpack.c.l.b16 %v545
    %v681 = vunpack.c.l.b16 %v546
    %v682 = vunpack.c.l.b16 %v547
    %v683 = vunpack.c.l.b16 %v548
    %v684 = vpack.c.b16 %v621, %v620
    %v685 = vpack.c.b16 %v623, %v622
    %v686 = vpack.c.b16 %v625, %v624
    %v687 = vpack.c.b16 %v627, %v626
    %v688 = vpack.c.b16 %v629, %v628
    %v689 = vpack.c.b16 %v631, %v630
    %v690 = vpack.c.b16 %v633, %v632
    %v691 = vpack.c.b16 %v635, %v634
    %v692 = vpack.c.b16 %v637, %v636
    %v693 = vpack.c.b16 %v639, %v638
    %v694 = vpack.c.b16 %v641, %v640
    %v695 = vpack.c.b16 %v643, %v642
    %v696 = vpack.c.b16 %v645, %v644
    %v697 = vpack.c.b16 %v647, %v646
    %v698 = vpack.c.b16 %v649, %v648
    %v699 = vpack.c.b16 %v651, %v650
    %v700 = vpack.c.b16 %v653, %v652
    %v701 = vpack.c.b16 %v655, %v654
    %v702 = vpack.c.b16 %v657, %v656
    %v703 = vpack.c.b16 %v659, %v658
    %v704 = vpack.c.b16 %v661, %v660
    %v705 = vpack.c.b16 %v663, %v662
    %v706 = vpack.c.b16 %v665, %v664
    %v707 = vpack.c.b16 %v667, %v666
    %v708 = vpack.c.b16 %v669, %v668
    %v709 = vpack.c.b16 %v671, %v670
    %v710 = vpack.c.b16 %v673, %v672
    %v711 = vpack.c.b16 %v675, %v674
    %v712 = vpack.c.b16 %v677, %v676
    %v713 = vpack.c.b16 %v679, %v678
    %v714 = vpack.c.b16 %v681, %v680
    %v715 = vpack.c.b16 %v683, %v682
    %748 = vmatprep.subr.bf16.mxu0 0
    %749 = vmatpush1.bf16.msra.mxu0 %v684
    %750 = vmatprep.subr.bf16.mxu0 0
    %751 = vmatpush1.bf16.msra.mxu0 %v685
    %752 = vmatprep.subr.bf16.mxu0 0
    %753 = vmatpush1.bf16.msra.mxu0 %v686
    %754 = vmatprep.subr.bf16.mxu0 0
    %755 = vmatpush1.bf16.msra.mxu0 %v687
    %756 = vmatprep.subr.bf16.mxu0 0
    %757 = vmatpush1.bf16.msra.mxu0 %v688
    %758 = vmatprep.subr.bf16.mxu0 0
    %759 = vmatpush1.bf16.msra.mxu0 %v689
    %760 = vmatprep.subr.bf16.mxu0 0
    %761 = vmatpush1.bf16.msra.mxu0 %v690
    %762 = vmatprep.subr.bf16.mxu0 0
    %763 = vmatpush1.bf16.msra.mxu0 %v691
    %764 = vmatprep.subr.bf16.mxu0 0
    %765 = vmatpush1.bf16.msra.mxu0 %v692
    %766 = vmatprep.subr.bf16.mxu0 0
    %767 = vmatpush1.bf16.msra.mxu0 %v693
    %768 = vmatprep.subr.bf16.mxu0 0
    %769 = vmatpush1.bf16.msra.mxu0 %v694
    %770 = vmatprep.subr.bf16.mxu0 0
    %771 = vmatpush1.bf16.msra.mxu0 %v695
    %772 = vmatprep.subr.bf16.mxu0 0
    %773 = vmatpush1.bf16.msra.mxu0 %v696
    %774 = vmatprep.subr.bf16.mxu0 0
    %775 = vmatpush1.bf16.msra.mxu0 %v697
    %776 = vmatprep.subr.bf16.mxu0 0
    %777 = vmatpush1.bf16.msra.mxu0 %v698
    %778 = vmatprep.subr.bf16.mxu0 0
    %779 = vmatpush1.bf16.msra.mxu0 %v699
    %780 = vmatprep.mubr.bf16.mxu0 %v482
    %781 = vmatmul.mubr.bf16.gmra.mrb[0].mxu0 %v481
    %v782 = vpop.f32.mrb[0].mxu0
    %v783 = vadd.f32 %v554, %v782
    %v784 = vpop.f32.mrb[0].mxu0
    %v785 = vpop.f32.mrb[0].mxu0
    %v786 = vpop.f32.mrb[0].mxu0
    %787 = vdwg.mxu0
    %788 = vmatprep.subr.bf16.mxu0 0
    %789 = vmatpush1.bf16.msra.mxu0 %v700
    %790 = vmatprep.subr.bf16.mxu0 0
    %791 = vmatpush1.bf16.msra.mxu0 %v701
    %792 = vmatprep.subr.bf16.mxu0 0
    %793 = vmatpush1.bf16.msra.mxu0 %v702
    %794 = vmatprep.subr.bf16.mxu0 0
    %795 = vmatpush1.bf16.msra.mxu0 %v703
    %796 = vmatprep.subr.bf16.mxu0 0
    %797 = vmatpush1.bf16.msra.mxu0 %v704
    %798 = vmatprep.subr.bf16.mxu0 0
    %799 = vmatpush1.bf16.msra.mxu0 %v705
    %800 = vmatprep.subr.bf16.mxu0 0
    %801 = vmatpush1.bf16.msra.mxu0 %v706
    %802 = vmatprep.subr.bf16.mxu0 0
    %803 = vmatpush1.bf16.msra.mxu0 %v707
    %804 = vmatprep.subr.bf16.mxu0 0
    %805 = vmatpush1.bf16.msra.mxu0 %v708
    %806 = vmatprep.subr.bf16.mxu0 0
    %807 = vmatpush1.bf16.msra.mxu0 %v709
    %808 = vmatprep.subr.bf16.mxu0 0
    %809 = vmatpush1.bf16.msra.mxu0 %v710
    %810 = vmatprep.subr.bf16.mxu0 0
    %811 = vmatpush1.bf16.msra.mxu0 %v711
    %812 = vmatprep.subr.bf16.mxu0 0
    %813 = vmatpush1.bf16.msra.mxu0 %v712
    %814 = vmatprep.subr.bf16.mxu0 0
    %815 = vmatpush1.bf16.msra.mxu0 %v713
    %816 = vmatprep.subr.bf16.mxu0 0
    %817 = vmatpush1.bf16.msra.mxu0 %v714
    %818 = vmatprep.subr.bf16.mxu0 0
    %819 = vmatpush1.bf16.msra.mxu0 %v715
    %820 = vmatprep.mubr.bf16.mxu0 %v484
    %821 = vmatmul.mubr.bf16.gmra.mrb[0].mxu0 %v483
    %v822 = vpop.f32.mrb[0].mxu0
    %v823 = vadd.f32 %v783, %v822
    %v824 = vpop.f32.mrb[0].mxu0
    %v825 = vpop.f32.mrb[0].mxu0
    %v826 = vpop.f32.mrb[0].mxu0
    %827 = vdwg.mxu0
    %vm828 = vcmp.gt.f32.partialorder %v823, 0.0
    %v829 = vmul.f32 %v823, 0.01
    %v830 = vsel %vm828, %v823, %v829
    %v831 = vpack.c.bf16 %v830, %v830
    %v832 = vld [vmem:[#allocation10] sm:$0xf]
    %v833 = vld [vmem:[#allocation10 + $0x4] sm:$0xf]
    %v834 = vld [vmem:[#allocation10 + $0x8] sm:$0xf]
    %v835 = vld [vmem:[#allocation10 + $0xc] sm:$0xf]
    %v836 = vld [vmem:[#allocation10 + $0x10] sm:$0xf]
    %v837 = vld [vmem:[#allocation10 + $0x14] sm:$0xf]
    %v838 = vld [vmem:[#allocation10 + $0x18] sm:$0xf]
    %v839 = vld [vmem:[#allocation10 + $0x1c] sm:$0xf]
    %v840 = vld [vmem:[#allocation10 + $0x20] sm:$0xf]
    %v841 = vld [vmem:[#allocation10 + $0x24] sm:$0xf]
    %v842 = vld [vmem:[#allocation10 + $0x28] sm:$0xf]
    %v843 = vld [vmem:[#allocation10 + $0x2c] sm:$0xf]
    %v844 = vld [vmem:[#allocation10 + $0x30] sm:$0xf]
    %v845 = vld [vmem:[#allocation10 + $0x34] sm:$0xf]
    %v846 = vld [vmem:[#allocation10 + $0x38] sm:$0xf]
    %v847 = vld [vmem:[#allocation10 + $0x3c] sm:$0xf]
    %v848 = vld [vmem:[%s8] sm:$0x1]
    %v850 = vlaneseq
    %v851 = vshrl.u32 %v850, 7
    %v852 = vsub.s32 0, %v851
    %v853 = vrot.slane %v848, %v852
    %v871 = vunpack.c.l.b16 %v832
    %v872 = vunpack.c.l.b16 %v833
    %v873 = vunpack.c.l.b16 %v834
    %v874 = vunpack.c.l.b16 %v835
    %v875 = vunpack.c.l.b16 %v836
    %v876 = vunpack.c.l.b16 %v837
    %v877 = vunpack.c.l.b16 %v838
    %v878 = vunpack.c.l.b16 %v839
    %v879 = vunpack.c.l.b16 %v840
    %v880 = vunpack.c.l.b16 %v841
    %v881 = vunpack.c.l.b16 %v842
    %v882 = vunpack.c.l.b16 %v843
    %v883 = vunpack.c.l.b16 %v844
    %v884 = vunpack.c.l.b16 %v845
    %v885 = vunpack.c.l.b16 %v846
    %v886 = vunpack.c.l.b16 %v847
    %v887 = vpack.c.b16 %v872, %v871
    %v888 = vpack.c.b16 %v874, %v873
    %v889 = vpack.c.b16 %v876, %v875
    %v890 = vpack.c.b16 %v878, %v877
    %v891 = vpack.c.b16 %v880, %v879
    %v892 = vpack.c.b16 %v882, %v881
    %v893 = vpack.c.b16 %v884, %v883
    %v894 = vpack.c.b16 %v886, %v885
    %903 = vmatprep.subr.bf16.mxu0 0
    %904 = vmatpush1.bf16.msra.mxu0 %v887
    %905 = vmatprep.subr.bf16.mxu0 0
    %906 = vmatpush1.bf16.msra.mxu0 %v888
    %907 = vmatprep.subr.bf16.mxu0 0
    %908 = vmatpush1.bf16.msra.mxu0 %v889
    %909 = vmatprep.subr.bf16.mxu0 0
    %910 = vmatpush1.bf16.msra.mxu0 %v890
    %911 = vmatprep.subr.bf16.mxu0 0
    %912 = vmatpush1.bf16.msra.mxu0 %v891
    %913 = vmatprep.subr.bf16.mxu0 0
    %914 = vmatpush1.bf16.msra.mxu0 %v892
    %915 = vmatprep.subr.bf16.mxu0 0
    %916 = vmatpush1.bf16.msra.mxu0 %v893
    %917 = vmatprep.subr.bf16.mxu0 0
    %918 = vmatpush1.bf16.msra.mxu0 %v894
    %919 = vmatprep.subr.bf16.mxu0 0
    %920 = vmatpush1.bf16.msra.mxu0 0
    %921 = vmatprep.subr.bf16.mxu0 0
    %922 = vmatpush1.bf16.msra.mxu0 0
    %923 = vmatprep.subr.bf16.mxu0 0
    %924 = vmatpush1.bf16.msra.mxu0 0
    %925 = vmatprep.subr.bf16.mxu0 0
    %926 = vmatpush1.bf16.msra.mxu0 0
    %927 = vmatprep.subr.bf16.mxu0 0
    %928 = vmatpush1.bf16.msra.mxu0 0
    %929 = vmatprep.subr.bf16.mxu0 0
    %930 = vmatpush1.bf16.msra.mxu0 0
    %931 = vmatprep.subr.bf16.mxu0 0
    %932 = vmatpush1.bf16.msra.mxu0 0
    %933 = vmatprep.subr.bf16.mxu0 0
    %934 = vmatpush1.bf16.msra.mxu0 0
    %935 = vmatprep.mubr.bf16.mxu0 0
    %936 = vmatmul.mubr.bf16.gmra.mrb[0].mxu0 %v831
    %v937 = vpop.f32.mrb[0].mxu0
    %v938 = vadd.f32 %v853, %v937
    %v939 = vpop.f32.mrb[0].mxu0
    %v940 = vpop.f32.mrb[0].mxu0
    %v941 = vpop.f32.mrb[0].mxu0
    %942 = vdwg.mxu0
    %943 = vst [vmem:[#allocation11] sm:$0xff] %v938
    // Predicated region
    $region58: #{tpu_custom_call.1} parent=1 // pred_check
      _
    $region59: #{tpu_custom_call.1} parent=1 // pred_check_branch
      %945 = sbr.rel (0) target = $region61
    $region60: #{tpu_custom_call.1} parent=1 // pred_region
      %s947 = ssub.s32 128, 128
      %948 = vsyncadd [#allocation4], %s947
      %s950 = sshll.u32 [#allocation11], 4
      %s951 = int_to_ptr.vmem [resolvable:$true] %s950
      %953 = dma.vmem_to_hbm [thread:$0]  %s951, 128, %s9, [#allocation4]
    $region61: #{tpu_custom_call.1} parent=1 // pred_fallthru
      _
    // Predicated region
    $region62: #{tpu_custom_call.1} parent=1 // pred_check
      _
    $region63: #{tpu_custom_call.1} parent=1 // pred_check_branch
      %955 = sbr.rel (0) target = $region65
    $region64: #{tpu_custom_call.1} parent=1 // pred_region
      %956 = dma.done [#allocation4], 128
    $region65: #{tpu_custom_call.1} parent=1 // pred_fallthru
      _
    %957 = vsyncpa [#allocation3], 1
    %958 = vsyncpa [#allocation6], 1
    %959 = vsyncpa [#allocation9], 1
    %960 = vsyncpa [#allocation4], 1

</llo_original>
